<compile_context>
chip_gen: v6e
topology: v6e:2x2x1
jax: 0.10.0
libtpu: 0.0.40
codegen_flags: <defaults>
</compile_context>

<pallas_src>
import functools
import math

import jax
import jax.numpy as jnp
from jax.experimental import pallas as pl
from jax.experimental.pallas import tpu as pltpu


# ---------------------------------------------------------------------------
# Helpers
# ---------------------------------------------------------------------------

def _round_up(x, m):
    return ((x + m - 1) // m) * m


def _pad2d(a, rows, cols):
    r, c = a.shape
    if r == rows and c == cols:
        return a
    return jnp.pad(a, ((0, rows - r), (0, cols - c)))


# ---------------------------------------------------------------------------
# Pallas kernels
# ---------------------------------------------------------------------------

def _linear_kernel(x_ref, w_ref, b_ref, o_ref, acc_ref, *, activation,
                   w_transposed, nk):
    @pl.when(pl.program_id(2) == 0)
    def _():
        acc_ref[...] = jnp.zeros_like(acc_ref)

    # bf16 operands for the MXU, fp32 accumulate.
    xb = x_ref[...].astype(jnp.bfloat16)
    wb = w_ref[...].astype(jnp.bfloat16)
    if w_transposed:
        # w block is (tn, tk); contract last dims -> (tm, tn), no relayout of w.
        acc_ref[...] += jax.lax.dot_general(
            xb, wb, (((1,), (1,)), ((), ())),
            preferred_element_type=jnp.float32)
    else:
        acc_ref[...] += jnp.dot(xb, wb, preferred_element_type=jnp.float32)

    @pl.when(pl.program_id(2) == nk - 1)
    def _():
        y = acc_ref[...] + b_ref[...]
        if activation == "gelu":
            # TODO(synk): PyTorch 'gelu' activation is exact (erf-based); tanh
            # approximation is used here for Mosaic-safe lowering.
            y = jax.nn.gelu(y, approximate=True)
        o_ref[...] = y.astype(o_ref.dtype)


def linear_pallas(x, w, b, activation=None, w_transposed=False,
                  tm=256, tn=512, tk=512):
    """x: (M, K) fp32.  w: (K, N) fp32, or (N, K) if w_transposed.  b: (N,).

    Tiled over (M, N, K) with an fp32 VMEM accumulator on the K axis so that
    large weights (FFN, vocab projection) are never fully resident in VMEM.
    """
    M, K = x.shape
    if w_transposed:
        N, Kw = w.shape
    else:
        Kw, N = w.shape
    assert Kw == K, (w.shape, x.shape)

    tm = min(tm, _round_up(M, 8))
    tn = min(tn, _round_up(N, 128))
    tk = min(tk, _round_up(K, 128))
    Mp, Np, Kp = _round_up(M, tm), _round_up(N, tn), _round_up(K, tk)

    xp = _pad2d(x, Mp, Kp)
    wp = _pad2d(w, Np, Kp) if w_transposed else _pad2d(w, Kp, Np)
    bp = _pad2d(b.reshape(1, N), 1, Np)

    nk = Kp // tk
    kernel = functools.partial(_linear_kernel, activation=activation,
                               w_transposed=w_transposed, nk=nk)
    if w_transposed:
        w_spec = pl.BlockSpec((tn, tk), lambda i, j, k: (j, k))
    else:
        w_spec = pl.BlockSpec((tk, tn), lambda i, j, k: (k, j))

    out = pl.pallas_call(
        kernel,
        out_shape=jax.ShapeDtypeStruct((Mp, Np), jnp.float32),
        grid=(Mp // tm, Np // tn, nk),
        in_specs=[
            pl.BlockSpec((tm, tk), lambda i, j, k: (i, k)),
            w_spec,
            pl.BlockSpec((1, tn), lambda i, j, k: (0, j)),
        ],
        out_specs=pl.BlockSpec((tm, tn), lambda i, j, k: (i, j)),
        scratch_shapes=[pltpu.VMEM((tm, tn), jnp.float32)],
        compiler_params=pltpu.CompilerParams(
            dimension_semantics=("parallel", "parallel", "arbitrary")),
    )(xp, wp, bp)

    if Mp != M or Np != N:
        out = out[:M, :N]
    return out


def _layernorm_kernel(*refs, eps, has_residual):
    if has_residual:
        x_ref, r_ref, g_ref, b_ref, o_ref = refs
        x = x_ref[...] + r_ref[...]          # fused residual add
    else:
        x_ref, g_ref, b_ref, o_ref = refs
        x = x_ref[...]
    mean = jnp.mean(x, axis=-1, keepdims=True)
    var = jnp.mean(jnp.square(x - mean), axis=-1, keepdims=True)
    y = (x - mean) * jax.lax.rsqrt(var + eps)
    o_ref[...] = (y * g_ref[...] + b_ref[...]).astype(o_ref.dtype)


def layernorm_pallas(x, g, b, eps, residual=None, tm=512):
    """LayerNorm over the last dim, optionally fusing `x + residual` first.

    x/residual: (M, D) fp32, g/b: (D,).  Elementwise math stays fp32 (v5e-safe).
    """
    M, D = x.shape
    tm = min(tm, _round_up(M, 8))
    Mp = _round_up(M, tm)

    xp = _pad2d(x, Mp, D)
    operands = [xp]
    in_specs = [pl.BlockSpec((tm, D), lambda i: (i, 0))]
    if residual is not None:
        operands.append(_pad2d(residual, Mp, D))
        in_specs.append(pl.BlockSpec((tm, D), lambda i: (i, 0)))
    operands += [g.reshape(1, D), b.reshape(1, D)]
    in_specs += [pl.BlockSpec((1, D), lambda i: (0, 0)),
                 pl.BlockSpec((1, D), lambda i: (0, 0))]

    kernel = functools.partial(_layernorm_kernel, eps=eps,
                               has_residual=residual is not None)
    out = pl.pallas_call(
        kernel,
        out_shape=jax.ShapeDtypeStruct((Mp, D), jnp.float32),
        grid=(Mp // tm,),
        in_specs=in_specs,
        out_specs=pl.BlockSpec((tm, D), lambda i: (i, 0)),
        compiler_params=pltpu.CompilerParams(dimension_semantics=("parallel",)),
    )(*operands)
    return out[:M] if Mp != M else out


def _mha_kernel(*refs, scale, has_mask):
    if has_mask:
        q_ref, k_ref, v_ref, m_ref, o_ref = refs
    else:
        q_ref, k_ref, v_ref, o_ref = refs
    q = q_ref[0].astype(jnp.bfloat16)          # (H, Tq, hd)
    k = k_ref[0].astype(jnp.bfloat16)          # (H, Tk, hd)
    # batched QK^T via einsum contracting the last dims (no .T relayout)
    s = jnp.einsum("hqd,hkd->hqk", q, k,
                   preferred_element_type=jnp.float32) * scale
    if has_mask:
        s = s + m_ref[0][None, :, :]           # (Tq, Tk) broadcast over heads
    s_max = jnp.max(s, axis=-1, keepdims=True)
    p = jnp.exp(s - s_max)
    denom = jnp.sum(p, axis=-1, keepdims=True)
    p = p * pl.reciprocal(denom, approx=True)  # divide on the EUP slot
    o_ref[0] = jnp.einsum("hqk,hkd->hqd", p.astype(jnp.bfloat16),
                          v_ref[0].astype(jnp.bfloat16),
                          preferred_element_type=jnp.float32).astype(o_ref.dtype)


def mha_pallas(q, k, v, mask_add=None):
    """q: (B, H, Tq, hd), k/v: (B, H, Tk, hd), mask_add: optional (B, Tq, Tk).

    One grid step per batch element processes all heads at once (bigger MXU
    blocks, B*H -> B grid steps).  mask is optional so the cross-attention path
    does not stream an all-zero tensor from HBM.
    """
    B, H, Tq, hd = q.shape
    Tk = k.shape[2]
    scale = 1.0 / math.sqrt(hd)
    has_mask = mask_add is not None
    kernel = functools.partial(_mha_kernel, scale=scale, has_mask=has_mask)

    in_specs = [
        pl.BlockSpec((1, H, Tq, hd), lambda b: (b, 0, 0, 0)),
        pl.BlockSpec((1, H, Tk, hd), lambda b: (b, 0, 0, 0)),
        pl.BlockSpec((1, H, Tk, hd), lambda b: (b, 0, 0, 0)),
    ]
    operands = [q, k, v]
    if has_mask:
        in_specs.append(pl.BlockSpec((1, Tq, Tk), lambda b: (b, 0, 0)))
        operands.append(mask_add)

    return pl.pallas_call(
        kernel,
        out_shape=jax.ShapeDtypeStruct((B, H, Tq, hd), jnp.float32),
        grid=(B,),
        in_specs=in_specs,
        out_specs=pl.BlockSpec((1, H, Tq, hd), lambda b: (b, 0, 0, 0)),
        compiler_params=pltpu.CompilerParams(dimension_semantics=("parallel",)),
    )(*operands)


# ---------------------------------------------------------------------------
# Model (glue around the kernels)
# ---------------------------------------------------------------------------

def self_attention(x, p, num_heads, mask_add):
    B, T, D = x.shape
    hd = D // num_heads
    # fused QKV projection: one HBM pass over x instead of three
    qkv = linear_pallas(x.reshape(-1, D), p["w_qkv"], p["b_qkv"])   # (B*T, 3D)
    q = qkv[:, :D].reshape(B, T, num_heads, hd).transpose(0, 2, 1, 3)
    k = qkv[:, D:2 * D].reshape(B, T, num_heads, hd).transpose(0, 2, 1, 3)
    v = qkv[:, 2 * D:].reshape(B, T, num_heads, hd).transpose(0, 2, 1, 3)
    ctx = mha_pallas(q, k, v, mask_add)                             # (B, H, T, hd)
    ctx = ctx.transpose(0, 2, 1, 3).reshape(B * T, D)
    return linear_pallas(ctx, p["wo"], p["bo"]).reshape(B, T, D)


def cross_attention(x_q, memory, p, num_heads):
    B, Tq, D = x_q.shape
    Tk = memory.shape[1]
    hd = D // num_heads
    q = linear_pallas(x_q.reshape(-1, D), p["wq"], p["bq"]).reshape(
        B, Tq, num_heads, hd).transpose(0, 2, 1, 3)
    # fused K/V projection over the visual memory
    kv = linear_pallas(memory.reshape(-1, D), p["w_kv"], p["b_kv"])  # (B*Tk, 2D)
    k = kv[:, :D].reshape(B, Tk, num_heads, hd).transpose(0, 2, 1, 3)
    v = kv[:, D:].reshape(B, Tk, num_heads, hd).transpose(0, 2, 1, 3)
    ctx = mha_pallas(q, k, v, None)                                  # no memory mask
    ctx = ctx.transpose(0, 2, 1, 3).reshape(B * Tq, D)
    return linear_pallas(ctx, p["wo"], p["bo"]).reshape(B, Tq, D)


def transformer_textual_head_forward(params, cfg, visual_features,
                                     caption_tokens, caption_lengths):
    B, C, Hh, Ww = visual_features.shape
    D = cfg["hidden_size"]
    nh = cfg["attention_heads"]

    # (1) visual projection:  NCHW -> (B, H*W, C) -> linear to hidden size
    vis = visual_features.reshape(B, C, Hh * Ww).transpose(0, 2, 1)  # (B, Nv, C)
    Nv = vis.shape[1]
    proj_vis = linear_pallas(
        vis.reshape(-1, C), params["visual_projection"]["w"],
        params["visual_projection"]["b"]).reshape(B, Nv, D)

    # (2) word + positional embedding  (gather kept in plain-JAX glue)
    T = caption_tokens.shape[1]
    word = params["word_emb"][caption_tokens]                 # (B, T, D)
    pos = params["pos_emb"][:T][None, :, :]                   # (1, T, D)
    emb = layernorm_pallas((word + pos).reshape(-1, D),
                           params["emb_ln_g"], params["emb_ln_b"],
                           eps=1e-8).reshape(B, T, D)
    # dropout(p=0.1) is identity at inference
    token_mask = (caption_tokens != cfg["padding_idx"]).astype(emb.dtype)[..., None]
    x = emb * token_mask

    # masks: unidirectional (future) mask + key-padding mask for self-attention.
    # Large finite negative (not -inf) so a fully masked row cannot produce NaN.
    pos_ids = jnp.arange(T)
    key_pad = caption_lengths[:, None] < (pos_ids[None, :] + 1)   # True -> pad key
    causal = pos_ids[None, :] > pos_ids[:, None]                  # True -> future key
    tgt_masked = causal[None, :, :] | key_pad[:, None, :]         # (B, T, T)
    tgt_mask_add = jnp.where(tgt_masked, -1e30, 0.0).astype(jnp.float32)

    # (3) post-norm transformer decoder (self-attn -> cross-attn -> FFN per layer)
    for lp in params["layers"]:
        sa = self_attention(x, lp["self_attn"], nh, tgt_mask_add)
        x = layernorm_pallas(sa.reshape(-1, D), lp["norm1_g"], lp["norm1_b"],
                             eps=1e-5, residual=x.reshape(-1, D)).reshape(B, T, D)

        ca = cross_attention(x, proj_vis, lp["cross_attn"], nh)
        x = layernorm_pallas(ca.reshape(-1, D), lp["norm2_g"], lp["norm2_b"],
                             eps=1e-5, residual=x.reshape(-1, D)).reshape(B, T, D)

        h = linear_pallas(x.reshape(-1, D), lp["ffn_w1"], lp["ffn_b1"],
                          activation="gelu")
        h = linear_pallas(h, lp["ffn_w2"], lp["ffn_b2"])
        x = layernorm_pallas(h, lp["norm3_g"], lp["norm3_b"],
                             eps=1e-5, residual=x.reshape(-1, D)).reshape(B, T, D)

    # (4) output projection tied to the word embedding (contract on D against the
    #     (V, D) table directly; no .T materialization), own bias.
    logits = linear_pallas(x.reshape(-1, D), params["word_emb"],
                           params["out_bias"], w_transposed=True)
    return logits.reshape(B, T, cfg["vocab_size"])


# ---------------------------------------------------------------------------
# Deterministic parameter init (BERT-like N(0, 0.02), zero biases)
# ---------------------------------------------------------------------------

def init_params(key, cfg):
    D = cfg["hidden_size"]
    V = cfg["vocab_size"]
    C = cfg["visual_feature_size"]
    F = cfg["feedforward_size"]
    L = cfg["num_layers"]
    Tmax = cfg["max_caption_length"]
    keys = iter(jax.random.split(key, 64))

    def w(shape):
        return 0.02 * jax.random.normal(next(keys), shape, jnp.float32)

    def zeros(shape):
        return jnp.zeros(shape, jnp.float32)

    def ones(shape):
        return jnp.ones(shape, jnp.float32)

    params = {}
    params["visual_projection"] = {"w": w((C, D)), "b": zeros((D,))}
    word = w((V, D)).at[cfg["padding_idx"]].set(0.0)   # [PAD] row zeroed
    params["word_emb"] = word
    params["pos_emb"] = w((Tmax, D))
    params["emb_ln_g"] = ones((D,))
    params["emb_ln_b"] = zeros((D,))

    def self_attn_params():
        return {"w_qkv": w((D, 3 * D)), "b_qkv": zeros((3 * D,)),
                "wo": w((D, D)), "bo": zeros((D,))}

    def cross_attn_params():
        return {"wq": w((D, D)), "bq": zeros((D,)),
                "w_kv": w((D, 2 * D)), "b_kv": zeros((2 * D,)),
                "wo": w((D, D)), "bo": zeros((D,))}

    layers = []
    for _ in range(L):
        layers.append({
            "self_attn": self_attn_params(),
            "cross_attn": cross_attn_params(),
            "norm1_g": ones((D,)), "norm1_b": zeros((D,)),
            "norm2_g": ones((D,)), "norm2_b": zeros((D,)),
            "norm3_g": ones((D,)), "norm3_b": zeros((D,)),
            "ffn_w1": w((D, F)), "ffn_b1": zeros((F,)),
            "ffn_w2": w((F, D)), "ffn_b2": zeros((D,)),
        })
    params["layers"] = layers
    params["out_bias"] = zeros((V,))
    return params


# ---------------------------------------------------------------------------
# Demo
# ---------------------------------------------------------------------------

if __name__ == "__main__":
    cfg = dict(
        visual_feature_size=4,
        vocab_size=64,
        hidden_size=32,
        num_layers=2,
        attention_heads=4,
        feedforward_size=64,
        max_caption_length=16,
        padding_idx=0,
    )

    key = jax.random.PRNGKey(0)
    pkey, vkey, tkey = jax.random.split(key, 3)
    params = init_params(pkey, cfg)

    B = 2
    T = cfg["max_caption_length"]
    visual_features = jax.random.normal(vkey, (B, cfg["visual_feature_size"], 4, 4),
                                        jnp.float32)          # NCHW like PyTorch
    caption_lengths = jnp.array([10, 16], jnp.int32)
    raw_tokens = jax.random.randint(tkey, (B, T), 1, cfg["vocab_size"], dtype=jnp.int32)
    pos = jnp.arange(T)[None, :]
    caption_tokens = jnp.where(pos < caption_lengths[:, None], raw_tokens,
                               cfg["padding_idx"]).astype(jnp.int32)

    logits = transformer_textual_head_forward(
        params, cfg, visual_features, caption_tokens, caption_lengths)
    logits = jax.block_until_ready(logits)

    assert logits.shape == (B, T, cfg["vocab_size"]), logits.shape
    assert bool(jnp.all(jnp.isfinite(logits)))
    print("KERNEL_OK")
</pallas_src>

<mosaic_0001>
module attributes {stable_mosaic.version = 11 : i64} {
  func.func @_linear_kernel(%arg0: i32, %arg1: i32, %arg2: i32, %arg3: memref<32x128xf32, #tpu.memory_space<vmem>>, %arg4: memref<128x128xf32, #tpu.memory_space<vmem>>, %arg5: memref<1x128xf32, #tpu.memory_space<vmem>>, %arg6: memref<32x128xf32, #tpu.memory_space<vmem>>, %arg7: memref<32x128xf32, #tpu.memory_space<vmem>>) attributes {dimension_semantics = [#tpu.dimension_semantics<parallel>, #tpu.dimension_semantics<parallel>, #tpu.dimension_semantics<arbitrary>], iteration_bounds = array<i64: 1, 1, 1>, scalar_prefetch = 0 : i64, scratch_operands = 1 : i64, tpu.core_type = #tpu.core_type<tc>, window_params = [{transform_indices = @transform_0, window_bounds = array<i64: 32, 128>}, {transform_indices = @transform_1, window_bounds = array<i64: 128, 128>}, {transform_indices = @transform_2, window_bounds = array<i64: 1, 128>}, {transform_indices = @transform_3, window_bounds = array<i64: 32, 128>}]} {
    %c0_i32 = arith.constant 0 : i32
    %0 = arith.cmpi eq, %arg2, %c0_i32 : i32
    %1 = arith.extui %0 : i1 to i32
    %c0_i32_0 = arith.constant 0 : i32
    %2 = arith.cmpi ne, %1, %c0_i32_0 : i32
    scf.if %2 {
      %cst_10 = arith.constant 0.000000e+00 : f32
      %14 = vector.broadcast %cst_10 : f32 to vector<32x128xf32>
      %c0_11 = arith.constant 0 : index
      %c0_12 = arith.constant 0 : index
      %15 = vector.load %arg7[%c0_11, %c0_12] : memref<32x128xf32, #tpu.memory_space<vmem>>, vector<32x128xf32>
      tpu.vector_store %arg7[%c0_11, %c0_12], %14 {strides = array<i32>} : memref<32x128xf32, #tpu.memory_space<vmem>>, vector<32x128xf32>,
    } else {
    }
    %c0 = arith.constant 0 : index
    %c0_1 = arith.constant 0 : index
    %3 = vector.load %arg3[%c0, %c0_1] : memref<32x128xf32, #tpu.memory_space<vmem>>, vector<32x128xf32>
    %4 = arith.truncf %3 : vector<32x128xf32> to vector<32x128xbf16>
    %c0_2 = arith.constant 0 : index
    %c0_3 = arith.constant 0 : index
    %5 = vector.load %arg4[%c0_2, %c0_3] : memref<128x128xf32, #tpu.memory_space<vmem>>, vector<128x128xf32>
    %6 = arith.truncf %5 : vector<128x128xf32> to vector<128x128xbf16>
    %c0_4 = arith.constant 0 : index
    %c0_5 = arith.constant 0 : index
    %7 = vector.load %arg7[%c0_4, %c0_5] : memref<32x128xf32, #tpu.memory_space<vmem>>, vector<32x128xf32>
    %cst = arith.constant dense<0.000000e+00> : vector<32x128xf32>
    %8 = tpu.matmul %4, %6, %cst {dimension_numbers = #tpu.dot_dimension_numbers<[1], [0], [0], [1], [0, 0, 1, 1], [], []>} : vector<32x128xbf16>, vector<128x128xbf16>, vector<32x128xf32> -> vector<32x128xf32>
    %9 = arith.addf %7, %8 : vector<32x128xf32>
    %c0_6 = arith.constant 0 : index
    %c0_7 = arith.constant 0 : index
    %10 = vector.load %arg7[%c0_6, %c0_7] : memref<32x128xf32, #tpu.memory_space<vmem>>, vector<32x128xf32>
    tpu.vector_store %arg7[%c0_6, %c0_7], %9 {strides = array<i32>} : memref<32x128xf32, #tpu.memory_space<vmem>>, vector<32x128xf32>,
    %c0_i32_8 = arith.constant 0 : i32
    %11 = arith.cmpi eq, %arg2, %c0_i32_8 : i32
    %12 = arith.extui %11 : i1 to i32
    %c0_i32_9 = arith.constant 0 : i32
    %13 = arith.cmpi ne, %12, %c0_i32_9 : i32
    scf.if %13 {
      %c0_10 = arith.constant 0 : index
      %c0_11 = arith.constant 0 : index
      %14 = vector.load %arg7[%c0_10, %c0_11] : memref<32x128xf32, #tpu.memory_space<vmem>>, vector<32x128xf32>
      %c0_12 = arith.constant 0 : index
      %c0_13 = arith.constant 0 : index
      %15 = vector.load %arg5[%c0_12, %c0_13] : memref<1x128xf32, #tpu.memory_space<vmem>>, vector<1x128xf32>
      %16 = vector.broadcast %15 : vector<1x128xf32> to vector<32x128xf32>
      %17 = arith.addf %14, %16 : vector<32x128xf32>
      %c0_14 = arith.constant 0 : index
      %c0_15 = arith.constant 0 : index
      %18 = vector.load %arg6[%c0_14, %c0_15] : memref<32x128xf32, #tpu.memory_space<vmem>>, vector<32x128xf32>
      tpu.vector_store %arg6[%c0_14, %c0_15], %17 {strides = array<i32>} : memref<32x128xf32, #tpu.memory_space<vmem>>, vector<32x128xf32>,
    } else {
    }
    return
  }
  func.func @transform_0(%arg0: i32, %arg1: i32, %arg2: i32) -> (i32, i32) {
    %c0_i32 = arith.constant 0 : i32
    return %arg0, %arg2 : i32, i32
  }
  func.func @transform_1(%arg0: i32, %arg1: i32, %arg2: i32) -> (i32, i32) {
    %c0_i32 = arith.constant 0 : i32
    return %arg2, %arg1 : i32, i32
  }
  func.func @transform_2(%arg0: i32, %arg1: i32, %arg2: i32) -> (i32, i32) {
    %c0_i32 = arith.constant 0 : i32
    %c0_i32_0 = arith.constant 0 : i32
    return %c0_i32, %arg1 : i32, i32
  }
  func.func @transform_3(%arg0: i32, %arg1: i32, %arg2: i32) -> (i32, i32) {
    %c0_i32 = arith.constant 0 : i32
    return %arg0, %arg1 : i32, i32
  }
}

</mosaic_0001>

<llo_original>
// kernel: tpu_custom_call.1
$region0: #{tpu_custom_call.1}
  #allocation0 [shape = 'u32[]', space=smem, size = 0x4, offset = 0x4, fixed_abs, tag = 'smem constant byte address 0x4 - core index']
  #allocation1 [shape = 'u32[144,128]{1,0:T(1,128)}', space=vmem, size = 0x12000, scoped, tag = 'internal scratch']
  #allocation2 [shape = 'f32[32,128]{1,0:T(8,128)}', space=vmem, size = 0x4000, scoped, tag = 'scratch operand']
  %s0 = inlined_call_operand.hbm [shape: f32[32,128], index: 0, kind: input, shape index: {}]
  %s1 = inlined_call_operand.hbm [shape: f32[128,128], index: 1, kind: input, shape index: {}]
  %s2 = inlined_call_operand.vmem [shape: f32[1,128], index: 2, kind: input, shape index: {}]
  %s3 = inlined_call_operand.hbm [shape: f32[32,128], index: 3, kind: output, shape index: {}]
  %s4 = sld [smem:[#allocation0]]
  $region38: #{tpu_custom_call.1} parent=0
    _
  %s6 = ssub.s32 1, %s4
  %s7 = scalar_select 0, %s6, %s4
  $region1: #{tpu_custom_call.1} parent=0
    #allocation3 [shape = 'u8[16384]{0}', space=vmem, size = 0x4000, scoped, tag = 'input window, operand 0, single buffered']
    #allocation4 [shape = 's32[1]{0}', space=sflag, size = 0x4, scoped, tag = 'scoped memory for tpu_custom_call.1']
    #allocation5 [shape = 's32[1]{0}', space=sflag, size = 0x4, scoped, tag = 'scoped memory for tpu_custom_call.1']
    #allocation6 [shape = 'u8[65536]{0}', space=vmem, size = 0x10000, scoped, tag = 'input window, operand 1, single buffered']
    #allocation7 [shape = 's32[1]{0}', space=sflag, size = 0x4, scoped, tag = 'scoped memory for tpu_custom_call.1']
    #allocation8 [shape = 'u8[16384]{0}', space=vmem, size = 0x4000, scoped, tag = 'output window, operand 0, single buffered']
    %8 = vsyncpa [#allocation4], 0
    %9 = vsyncpa [#allocation7], 0
    %10 = vsyncpa [#allocation5], 0
    // Predicated region
    $region2: #{tpu_custom_call.1} parent=1 // pred_check
      _
    $region3: #{tpu_custom_call.1} parent=1 // pred_check_branch
      %12 = sbr.rel (0) target = $region5
    $region4: #{tpu_custom_call.1} parent=1 // pred_region
      %s14 = ssub.s32 512, 512
      %15 = vsyncadd [#allocation4], %s14
      %s16 = sshll.u32 [#allocation3], 4
      %s17 = int_to_ptr.vmem [resolvable:$true] %s16
      %22 = dma.hbm_to_vmem [thread:$0]  %s0, 512, %s17, [#allocation4], 128, 128, 8
    $region5: #{tpu_custom_call.1} parent=1 // pred_fallthru
      _
    // Predicated region
    $region6: #{tpu_custom_call.1} parent=1 // pred_check
      _
    $region7: #{tpu_custom_call.1} parent=1 // pred_check_branch
      %24 = sbr.rel (0) target = $region9
    $region8: #{tpu_custom_call.1} parent=1 // pred_region
      %s26 = ssub.s32 2048, 2048
      %27 = vsyncadd [#allocation7], %s26
      %s28 = sshll.u32 [#allocation6], 4
      %s29 = int_to_ptr.vmem [resolvable:$true] %s28
      %34 = dma.hbm_to_vmem [thread:$0]  %s1, 2048, %s29, [#allocation7], 128, 128, 8
    $region9: #{tpu_custom_call.1} parent=1 // pred_fallthru
      _
    // Predicated region
    $region10: #{tpu_custom_call.1} parent=1 // pred_check
      _
    $region11: #{tpu_custom_call.1} parent=1 // pred_check_branch
      %36 = sbr.rel (0) target = $region13
    $region12: #{tpu_custom_call.1} parent=1 // pred_region
      _
    $region13: #{tpu_custom_call.1} parent=1 // pred_fallthru
      _
    // Predicated region
    $region14: #{tpu_custom_call.1} parent=1 // pred_check
      _
    $region15: #{tpu_custom_call.1} parent=1 // pred_check_branch
      %38 = sbr.rel (0) target = $region17
    $region16: #{tpu_custom_call.1} parent=1 // pred_region
      %39 = dma.done [#allocation4], 512
    $region17: #{tpu_custom_call.1} parent=1 // pred_fallthru
      _
    // Predicated region
    $region18: #{tpu_custom_call.1} parent=1 // pred_check
      _
    $region19: #{tpu_custom_call.1} parent=1 // pred_check_branch
      %41 = sbr.rel (0) target = $region21
    $region20: #{tpu_custom_call.1} parent=1 // pred_region
      %42 = dma.done [#allocation7], 2048
    $region21: #{tpu_custom_call.1} parent=1 // pred_fallthru
      _
    %p44 = scmp.eq.s32.totalorder 0, 0
    // Predicated region
    $region22: #{tpu_custom_call.1} parent=1 // pred_check
      %p45 = pneg %p44
    $region23: #{tpu_custom_call.1} parent=1 // pred_check_branch
      %47 = sbr.rel (%p45) target = $region25
    $region24: #{tpu_custom_call.1} parent=1 // pred_region
      %48 = vst [vmem:[#allocation2] sm:$0xff] 0.0
      %49 = vst [vmem:[#allocation2 + $0x8] sm:$0xff] 0.0
      %50 = vst [vmem:[#allocation2 + $0x10] sm:$0xff] 0.0
      %51 = vst [vmem:[#allocation2 + $0x18] sm:$0xff] 0.0
    $region25: #{tpu_custom_call.1} parent=1 // pred_fallthru
      _
    %v52 = vld [vmem:[#allocation3] sm:$0xff]
    %v53 = vld [vmem:[#allocation3 + $0x8] sm:$0xff]
    %v54 = vld [vmem:[#allocation3 + $0x10] sm:$0xff]
    %v55 = vld [vmem:[#allocation3 + $0x18] sm:$0xff]
    %v56 = vpack.c.bf16 %v53, %v52
    %v57 = vpack.c.bf16 %v55, %v54
    %v58 = vld [vmem:[#allocation6] sm:$0xff]
    %v59 = vld [vmem:[#allocation6 + $0x8] sm:$0xff]
    %v60 = vld [vmem:[#allocation6 + $0x10] sm:$0xff]
    %v61 = vld [vmem:[#allocation6 + $0x18] sm:$0xff]
    %v62 = vld [vmem:[#allocation6 + $0x20] sm:$0xff]
    %v63 = vld [vmem:[#allocation6 + $0x28] sm:$0xff]
    %v64 = vld [vmem:[#allocation6 + $0x30] sm:$0xff]
    %v65 = vld [vmem:[#allocation6 + $0x38] sm:$0xff]
    %v66 = vld [vmem:[#allocation6 + $0x40] sm:$0xff]
    %v67 = vld [vmem:[#allocation6 + $0x48] sm:$0xff]
    %v68 = vld [vmem:[#allocation6 + $0x50] sm:$0xff]
    %v69 = vld [vmem:[#allocation6 + $0x58] sm:$0xff]
    %v70 = vld [vmem:[#allocation6 + $0x60] sm:$0xff]
    %v71 = vld [vmem:[#allocation6 + $0x68] sm:$0xff]
    %v72 = vld [vmem:[#allocation6 + $0x70] sm:$0xff]
    %v73 = vld [vmem:[#allocation6 + $0x78] sm:$0xff]
    %v74 = vpack.c.bf16 %v59, %v58
    %v75 = vpack.c.bf16 %v61, %v60
    %v76 = vpack.c.bf16 %v63, %v62
    %v77 = vpack.c.bf16 %v65, %v64
    %v78 = vpack.c.bf16 %v67, %v66
    %v79 = vpack.c.bf16 %v69, %v68
    %v80 = vpack.c.bf16 %v71, %v70
    %v81 = vpack.c.bf16 %v73, %v72
    %v82 = vld [vmem:[#allocation2] sm:$0xff]
    %v83 = vld [vmem:[#allocation2 + $0x8] sm:$0xff]
    %v84 = vld [vmem:[#allocation2 + $0x10] sm:$0xff]
    %v85 = vld [vmem:[#allocation2 + $0x18] sm:$0xff]
    %86 = vmatprep.subr.bf16.mxu0 0
    %87 = vmatpush1.bf16.msra.mxu0 %v81
    %88 = vmatprep.subr.bf16.mxu0 0
    %89 = vmatpush1.bf16.msra.mxu0 %v80
    %90 = vmatprep.subr.bf16.mxu0 0
    %91 = vmatpush1.bf16.msra.mxu0 %v79
    %92 = vmatprep.subr.bf16.mxu0 0
    %93 = vmatpush1.bf16.msra.mxu0 %v78
    %94 = vmatprep.subr.bf16.mxu0 0
    %95 = vmatpush1.bf16.msra.mxu0 %v77
    %96 = vmatprep.subr.bf16.mxu0 0
    %97 = vmatpush1.bf16.msra.mxu0 %v76
    %98 = vmatprep.subr.bf16.mxu0 0
    %99 = vmatpush1.bf16.msra.mxu0 %v75
    %100 = vmatprep.subr.bf16.mxu0 0
    %101 = vmatpush1.bf16.msra.mxu0 %v74
    %102 = vmatprep.subr.bf16.mxu0 0
    %103 = vmatpush2.bf16.msra.mxu0 0
    %104 = vmatprep.subr.bf16.mxu0 0
    %105 = vmatpush2.bf16.msra.mxu0 0
    %106 = vmatprep.subr.bf16.mxu0 0
    %107 = vmatpush2.bf16.msra.mxu0 0
    %108 = vmatprep.subr.bf16.mxu0 0
    %109 = vmatpush2.bf16.msra.mxu0 0
    %110 = vmatprep.subr.bf16.mxu0 0
    %111 = vmatpush2.bf16.msra.mxu0 0
    %112 = vmatprep.subr.bf16.mxu0 0
    %113 = vmatpush2.bf16.msra.mxu0 0
    %114 = vmatprep.subr.bf16.mxu0 0
    %115 = vmatpush2.bf16.msra.mxu0 0
    %116 = vmatprep.subr.bf16.mxu0 0
    %117 = vmatpush2.bf16.msra.mxu0 0
    %118 = vmatprep.mubr.bf16.mxu0 0
    %119 = vmatmul.mubr.bf16.gmra.mxu0 %v56
    %v120 = vpop.f32.mrf.mxu0
    %v121 = vadd.f32 0.0, %v120
    %v122 = vpop.f32.mrf.mxu0
    %v123 = vpop.f32.mrf.mxu0
    %v124 = vadd.f32 0.0, %v123
    %v125 = vpop.f32.mrf.mxu0
    %126 = vmatprep.mubr.bf16.mxu0 0
    %127 = vmatmul.mubr.bf16.gmra.mxu0 %v57
    %v128 = vpop.f32.mrf.mxu0
    %v129 = vadd.f32 0.0, %v128
    %v130 = vpop.f32.mrf.mxu0
    %v131 = vpop.f32.mrf.mxu0
    %v132 = vadd.f32 0.0, %v131
    %v133 = vpop.f32.mrf.mxu0
    %134 = vdwg.mxu0
    %v135 = vadd.f32 %v82, %v121
    %v136 = vadd.f32 %v83, %v124
    %v137 = vadd.f32 %v84, %v129
    %v138 = vadd.f32 %v85, %v132
    %139 = vst [vmem:[#allocation2] sm:$0xff] %v135
    %140 = vst [vmem:[#allocation2 + $0x8] sm:$0xff] %v136
    %141 = vst [vmem:[#allocation2 + $0x10] sm:$0xff] %v137
    %142 = vst [vmem:[#allocation2 + $0x18] sm:$0xff] %v138
    // Predicated region
    $region26: #{tpu_custom_call.1} parent=1 // pred_check
      %p143 = pneg %p44
    $region27: #{tpu_custom_call.1} parent=1 // pred_check_branch
      %145 = sbr.rel (%p143) target = $region29
    $region28: #{tpu_custom_call.1} parent=1 // pred_region
      %v146 = vld [vmem:[#allocation2] sm:$0xff]
      %v147 = vld [vmem:[#allocation2 + $0x8] sm:$0xff]
      %v148 = vld [vmem:[#allocation2 + $0x10] sm:$0xff]
      %v149 = vld [vmem:[#allocation2 + $0x18] sm:$0xff]
      %v150 = vld [vmem:[%s2] sm:$0x1]
      %v152 = vlaneseq
      %v153 = vshrl.u32 %v152, 7
      %v154 = vsub.s32 0, %v153
      %v155 = vrot.slane %v150, %v154
      %v157 = vadd.f32 %v146, %v155
      %v158 = vadd.f32 %v147, %v155
      %v159 = vadd.f32 %v148, %v155
      %v160 = vadd.f32 %v149, %v155
      %161 = vst [vmem:[#allocation8] sm:$0xff] %v157
      %162 = vst [vmem:[#allocation8 + $0x8] sm:$0xff] %v158
      %163 = vst [vmem:[#allocation8 + $0x10] sm:$0xff] %v159
      %164 = vst [vmem:[#allocation8 + $0x18] sm:$0xff] %v160
    $region29: #{tpu_custom_call.1} parent=1 // pred_fallthru
      _
    // Predicated region
    $region30: #{tpu_custom_call.1} parent=1 // pred_check
      _
    $region31: #{tpu_custom_call.1} parent=1 // pred_check_branch
      %166 = sbr.rel (0) target = $region33
    $region32: #{tpu_custom_call.1} parent=1 // pred_region
      %s168 = ssub.s32 512, 512
      %169 = vsyncadd [#allocation5], %s168
      %s170 = sshll.u32 [#allocation8], 4
      %s171 = int_to_ptr.vmem [resolvable:$true] %s170
      %176 = dma.vmem_to_hbm [thread:$0]  %s171, 512, %s3, [#allocation5], 128, 128, 8
    $region33: #{tpu_custom_call.1} parent=1 // pred_fallthru
      _
    // Predicated region
    $region34: #{tpu_custom_call.1} parent=1 // pred_check
      _
    $region35: #{tpu_custom_call.1} parent=1 // pred_check_branch
      %178 = sbr.rel (0) target = $region37
    $region36: #{tpu_custom_call.1} parent=1 // pred_region
      %179 = dma.done [#allocation5], 512
    $region37: #{tpu_custom_call.1} parent=1 // pred_fallthru
      _
    %180 = vsyncpa [#allocation4], 1
    %181 = vsyncpa [#allocation7], 1
    %182 = vsyncpa [#allocation5], 1

</llo_original>
